<compile_context>
chip_gen: v7x
topology: tpu7x:2x2x1
jax: 0.10.0
libtpu: 0.0.40
codegen_flags: <defaults>
</compile_context>

<pallas_src>
import jax
import jax.numpy as jnp
from jax import lax
from jax.experimental import pallas as pl
from jax.experimental.pallas import tpu as pltpu

HIDDEN = 10


def _round_up(n, m):
    return ((n + m - 1) // m) * m


def _vmem_capacity_bytes():
    try:
        return int(getattr(pltpu.get_tpu_info(), "vmem_capacity_bytes", 64 << 20))
    except Exception:
        return 64 << 20          # conservative fallback (v7x per-core VMEM)


def _select_tile_b(B, F, vmem_cap, itemsize):
    """Batch tile: sized by bytes per grid step, capped by VMEM and by the batch."""
    b_up = _round_up(max(B, 1), 128)
    # ~2 MiB of useful x bytes per grid step, at most 8192 rows, never more than the batch.
    tile = _round_up(max((2 << 20) // max(F * itemsize, 1), 128), 128)
    tile = min(tile, 8192, b_up)
    # Keep the 2 double-buffered, lane-padded x tiles within ~25% of physical VMEM.
    # TODO(synk): for very large F (>= ~16K) a feature (K) grid axis + f32 accumulator
    # would keep tile_b large instead of shrinking it here.
    per_row_vmem = _round_up(F, 128) * itemsize
    max_rows = max(128, ((vmem_cap // 4) // (2 * per_row_vmem)) // 128 * 128)
    tile = min(tile, max_rows)
    # Ensure >= 2 grid steps when the batch spans them: lets dimension_semantics
    # ("parallel",) shard across v7x's two TensorCores; costs ~0.35us on 1-TC chips.
    if b_up >= 256:
        tile = min(tile, _round_up(pl.cdiv(b_up, 2), 128))
    return tile


def _mlp_kernel(x_ref, w1t_ref, b1_ref, w3_ref, b3_ref, o_ref):
    """One batch tile of  y = relu(x @ W1 + b1) @ w3 + b3, computed batch-on-lanes."""
    x = x_ref[...].astype(jnp.float32)                       # (TILE_B, F); cast hides under DMA
    # h_T[h, b] = sum_f w1_t[h, f] * x[b, f]  -> (HIDDEN, TILE_B).
    # Contraction over the last dim of both operands (the q.k^T pattern): no explicit
    # transpose of the x tile, and the result is lane-dense in batch instead of
    # 10/128-lane sparse.
    h = lax.dot_general(
        w1t_ref[...], x,
        dimension_numbers=(((1,), (1,)), ((), ())),
        preferred_element_type=jnp.float32)
    h = jnp.maximum(h + b1_ref[...], 0.0)                    # bias + ReLU, f32 on the VPU
    # lin3 (10 -> 1): VPU multiply + sublane (HIDDEN-axis) reduce; lands directly as the
    # (1, TILE_B) lane-dense output block -> full-width unmasked store, no relayout.
    y = jnp.sum(h * w3_ref[...], axis=0, keepdims=True) + b3_ref[0]
    o_ref[...] = y.astype(o_ref.dtype)


@jax.jit
def simple_model_forward(x, w1, b1, w3, b3):
    """Fused SimpleModel forward.

    x: (B, F).  w1: (F, 10), b1: (10,), w3: (10, 1), b3: (1,).  Returns (B, 1) f32.
    """
    B, F = x.shape
    itemsize = jnp.dtype(x.dtype).itemsize
    vmem_cap = _vmem_capacity_bytes()
    tile_b = _select_tile_b(B, F, vmem_cap, itemsize)
    num_tiles = pl.cdiv(B, tile_b)

    # Tiny weight preps (O(10*F) elements) -- negligible next to streaming x.
    w1_t = w1.astype(jnp.float32).T                     # (10, F): no 12.8x lane padding in VMEM
    b1_c = b1.astype(jnp.float32).reshape(HIDDEN, 1)    # broadcasts over lanes (batch)
    w3_c = w3.astype(jnp.float32).reshape(HIDDEN, 1)
    b3_c = b3.astype(jnp.float32).reshape(1)            # SMEM scalar

    # Generation-aware VMEM budget (64 MiB/TC on v7x, 128 MiB on v5e/v6e).
    f_lanes = _round_up(F, 128)
    vmem_needed = (2 * tile_b * f_lanes * itemsize      # double-buffered x tile
                   + 2 * tile_b * f_lanes * 4           # in-kernel f32 view of the tile (worst case)
                   + 2 * _round_up(HIDDEN, 8) * f_lanes * 4   # W1^T (+ margin)
                   + 2 * 8 * tile_b * 4                 # output blocks (sublane-padded)
                   + (2 << 20))                         # biases / compiler scratch / headroom
    vmem_limit = int(min(vmem_cap * 3 // 4, max(16 << 20, 2 * vmem_needed)))

    resident = dict(pipeline_mode=pl.Buffered(buffer_count=1))   # never re-DMA'd: 1 buffer

    out = pl.pallas_call(
        _mlp_kernel,
        out_shape=jax.ShapeDtypeStruct((1, num_tiles * tile_b), jnp.float32),
        grid=(num_tiles,),
        in_specs=[
            pl.BlockSpec((tile_b, F), lambda i: (i, 0)),              # x tile (streamed; tail block is read-padded)
            pl.BlockSpec((HIDDEN, F), lambda i: (0, 0), **resident),  # W1^T (resident)
            pl.BlockSpec((HIDDEN, 1), lambda i: (0, 0), **resident),  # b1   (resident)
            pl.BlockSpec((HIDDEN, 1), lambda i: (0, 0), **resident),  # w3 column (resident)
            pl.BlockSpec(memory_space=pltpu.MemorySpace.SMEM),        # b3 scalar
        ],
        out_specs=pl.BlockSpec((1, tile_b), lambda i: (0, i)),        # lane-dense output slab
        compiler_params=pltpu.CompilerParams(
            dimension_semantics=("parallel",),   # megacore sharding on v7x; no-op on v5e/v6e
            vmem_limit_bytes=vmem_limit,
        ),
    )(x, w1_t, b1_c, w3_c, b3_c)

    return out[0, :B].reshape(B, 1)


def init_params(key, n_features=1):
    """torch.nn.Linear-style init: U(-1/sqrt(fan_in), +1/sqrt(fan_in)); weights stored (in, out)."""
    k1, k2, k3, k4, k5, k6 = jax.random.split(key, 6)
    bound1 = 1.0 / jnp.sqrt(jnp.float32(n_features))
    bound3 = 1.0 / jnp.sqrt(jnp.float32(HIDDEN))
    w1 = jax.random.uniform(k1, (n_features, HIDDEN), jnp.float32, -bound1, bound1)
    b1 = jax.random.uniform(k2, (HIDDEN,), jnp.float32, -bound1, bound1)
    # lin2 exists in the PyTorch __init__ but is not used in forward; kept only for parity.
    w2 = jax.random.uniform(k3, (HIDDEN, HIDDEN), jnp.float32, -bound3, bound3)  # unused
    b2 = jax.random.uniform(k4, (HIDDEN,), jnp.float32, -bound3, bound3)         # unused
    w3 = jax.random.uniform(k5, (HIDDEN, 1), jnp.float32, -bound3, bound3)
    b3 = jax.random.uniform(k6, (1,), jnp.float32, -bound3, bound3)
    return w1, b1, w2, b2, w3, b3


def _reference(x, w1, b1, w3, b3):
    h = jnp.maximum(jnp.dot(x, w1, precision=lax.Precision.HIGHEST) + b1, 0.0)
    return jnp.dot(h, w3, precision=lax.Precision.HIGHEST) + b3


if __name__ == "__main__":
    key = jax.random.PRNGKey(0)
    kx, kp, kx2 = jax.random.split(key, 3)

    # Small shapes consistent with the module (Linear(n_features -> 10 -> 1)).
    n_features, batch = 4, 16
    x = jax.random.normal(kx, (batch, n_features), dtype=jnp.float32)
    w1, b1, _w2, _b2, w3, b3 = init_params(kp, n_features=n_features)

    y = jax.block_until_ready(simple_model_forward(x, w1, b1, w3, b3))
    ref = _reference(x, w1, b1, w3, b3)
    assert y.shape == (batch, 1)
    assert jnp.allclose(y, ref, atol=1e-4, rtol=1e-4)

    # Second shape: multi-tile grid + ragged batch tail (exercises cdiv grid / tail handling).
    n_features2, batch2 = 7, 300
    x2 = jax.random.normal(kx2, (batch2, n_features2), dtype=jnp.float32)
    w1b, b1b, _w2b, _b2b, w3b, b3b = init_params(jax.random.fold_in(kp, 1),
                                                 n_features=n_features2)
    y2 = jax.block_until_ready(simple_model_forward(x2, w1b, b1b, w3b, b3b))
    ref2 = _reference(x2, w1b, b1b, w3b, b3b)
    assert y2.shape == (batch2, 1)
    assert jnp.allclose(y2, ref2, atol=1e-4, rtol=1e-4)

    print("KERNEL_OK")
</pallas_src>

<mosaic_0001>
module attributes {stable_mosaic.version = 11 : i64} {
  func.func @_mlp_kernel(%arg0: i32, %arg1: memref<128x4xf32, #tpu.memory_space<vmem>>, %arg2: memref<10x4xf32, #tpu.memory_space<vmem>>, %arg3: memref<10x1xf32, #tpu.memory_space<vmem>>, %arg4: memref<10x1xf32, #tpu.memory_space<vmem>>, %arg5: memref<1xf32, #tpu.memory_space<smem>>, %arg6: memref<1x128xf32, #tpu.memory_space<vmem>>) attributes {dimension_semantics = [#tpu.dimension_semantics<parallel>], iteration_bounds = array<i64: 1>, scalar_prefetch = 0 : i64, scratch_operands = 0 : i64, tpu.core_type = #tpu.core_type<tc>, window_params = [{transform_indices = @transform_0, window_bounds = array<i64: 128, 4>}, {pipeline_mode = #tpu.pipeline_mode<synchronous>, transform_indices = @transform_1, window_bounds = array<i64: 10, 4>}, {pipeline_mode = #tpu.pipeline_mode<synchronous>, transform_indices = @transform_2, window_bounds = array<i64: 10, 1>}, {pipeline_mode = #tpu.pipeline_mode<synchronous>, transform_indices = @transform_3, window_bounds = array<i64: 10, 1>}, {transform_indices = @transform_4, window_bounds = array<i64: 1>}, {transform_indices = @transform_5, window_bounds = array<i64: 1, 128>}]} {
    %c0 = arith.constant 0 : index
    %c0_0 = arith.constant 0 : index
    %0 = vector.load %arg1[%c0, %c0_0] : memref<128x4xf32, #tpu.memory_space<vmem>>, vector<128x4xf32>
    %c0_1 = arith.constant 0 : index
    %c0_2 = arith.constant 0 : index
    %1 = vector.load %arg2[%c0_1, %c0_2] : memref<10x4xf32, #tpu.memory_space<vmem>>, vector<10x4xf32>
    %cst = arith.constant dense<0.000000e+00> : vector<10x128xf32>
    %2 = tpu.matmul %1, %0, %cst {dimension_numbers = #tpu.dot_dimension_numbers<[1], [1], [0], [0], [0, 0, 1, 0], [], []>} : vector<10x4xf32>, vector<128x4xf32>, vector<10x128xf32> -> vector<10x128xf32>
    %c0_3 = arith.constant 0 : index
    %c0_4 = arith.constant 0 : index
    %3 = vector.load %arg3[%c0_3, %c0_4] : memref<10x1xf32, #tpu.memory_space<vmem>>, vector<10x1xf32>
    %4 = vector.broadcast %3 : vector<10x1xf32> to vector<10x128xf32>
    %5 = arith.addf %2, %4 : vector<10x128xf32>
    %cst_5 = arith.constant 0.000000e+00 : f32
    %6 = vector.broadcast %cst_5 : f32 to vector<10x128xf32>
    %7 = arith.maximumf %5, %6 : vector<10x128xf32>
    %c0_6 = arith.constant 0 : index
    %c0_7 = arith.constant 0 : index
    %8 = vector.load %arg4[%c0_6, %c0_7] : memref<10x1xf32, #tpu.memory_space<vmem>>, vector<10x1xf32>
    %9 = vector.broadcast %8 : vector<10x1xf32> to vector<10x128xf32>
    %10 = arith.mulf %7, %9 : vector<10x128xf32>
    %cst_8 = arith.constant dense<0.000000e+00> : vector<128xf32>
    %11 = vector.multi_reduction <add>, %10, %cst_8 [0] : vector<10x128xf32> to vector<128xf32>
    %12 = vector.shape_cast %11 : vector<128xf32> to vector<1x128xf32>
    %c0_9 = arith.constant 0 : index
    %13 = memref.load %arg5[%c0_9] : memref<1xf32, #tpu.memory_space<smem>>
    %14 = vector.broadcast %13 : f32 to vector<1x128xf32>
    %15 = arith.addf %12, %14 : vector<1x128xf32>
    %c0_10 = arith.constant 0 : index
    %c0_11 = arith.constant 0 : index
    %16 = vector.load %arg6[%c0_10, %c0_11] : memref<1x128xf32, #tpu.memory_space<vmem>>, vector<1x128xf32>
    tpu.vector_store %arg6[%c0_10, %c0_11], %15 {strides = array<i32>} : memref<1x128xf32, #tpu.memory_space<vmem>>, vector<1x128xf32>,
    return
  }
  func.func @transform_0(%arg0: i32) -> (i32, i32) {
    %c0_i32 = arith.constant 0 : i32
    %c0_i32_0 = arith.constant 0 : i32
    return %arg0, %c0_i32 : i32, i32
  }
  func.func @transform_1(%arg0: i32) -> (i32, i32) {
    %c0_i32 = arith.constant 0 : i32
    %c0_i32_0 = arith.constant 0 : i32
    %c0_i32_1 = arith.constant 0 : i32
    return %c0_i32, %c0_i32_0 : i32, i32
  }
  func.func @transform_2(%arg0: i32) -> (i32, i32) {
    %c0_i32 = arith.constant 0 : i32
    %c0_i32_0 = arith.constant 0 : i32
    %c0_i32_1 = arith.constant 0 : i32
    return %c0_i32, %c0_i32_0 : i32, i32
  }
  func.func @transform_3(%arg0: i32) -> (i32, i32) {
    %c0_i32 = arith.constant 0 : i32
    %c0_i32_0 = arith.constant 0 : i32
    %c0_i32_1 = arith.constant 0 : i32
    return %c0_i32, %c0_i32_0 : i32, i32
  }
  func.func @transform_4(%arg0: i32) -> i32 {
    %c0_i32 = arith.constant 0 : i32
    %c0_i32_0 = arith.constant 0 : i32
    return %c0_i32 : i32
  }
  func.func @transform_5(%arg0: i32) -> (i32, i32) {
    %c0_i32 = arith.constant 0 : i32
    %c0_i32_0 = arith.constant 0 : i32
    return %c0_i32, %arg0 : i32, i32
  }
}

</mosaic_0001>

<llo_original>
// kernel: simple_model_forward.1
$region0: #{simple_model_forward.1}
  #allocation0 [shape = 'u32[]', space=smem, size = 0x4, offset = 0x4, fixed_abs, tag = 'smem constant byte address 0x4 - core index']
  #allocation1 [shape = 'u32[144,128]{1,0:T(1,128)}', space=vmem, size = 0x12000, scoped, tag = 'internal scratch']
  #allocation2 [shape = 'f32[1]{0:T(128)S(6)}', space=smem, size = 0x200, scoped, tag = 'scoped memory for simple_model_forward.1']
  %s0 = inlined_call_operand.vmem [shape: f32[16,4], index: 0, kind: input, shape index: {}]
  %s1 = inlined_call_operand.vmem [shape: f32[10,4], index: 1, kind: input, shape index: {}]
  %s2 = inlined_call_operand.vmem [shape: f32[10,1], index: 2, kind: input, shape index: {}]
  %s3 = inlined_call_operand.vmem [shape: f32[10,1], index: 3, kind: input, shape index: {}]
  %s4 = inlined_call_operand.<no memory space> [shape: f32[1], index: 4, kind: input, shape index: {}]
  %s5 = inlined_call_operand.vmem [shape: f32[1,128], index: 5, kind: output, shape index: {}]
  %s6 = sld [smem:[#allocation0]]
  $region30: #{simple_model_forward.1} parent=0
    _
  %s8 = ssub.s32 1, %s6
  %s9 = scalar_select 0, %s8, %s6
  %10 = sst [smem:[#allocation2]] %s4
  // Predicated region
  $region2: #{simple_model_forward.1} parent=0 // pred_check
    _
  $region3: #{simple_model_forward.1} parent=0 // pred_check_branch
    %12 = sbr.rel (0) target = $region5
  $region4: #{simple_model_forward.1} parent=0 // pred_region
    _
  $region5: #{simple_model_forward.1} parent=0 // pred_fallthru
    _
  // Predicated region
  $region6: #{simple_model_forward.1} parent=0 // pred_check
    _
  $region7: #{simple_model_forward.1} parent=0 // pred_check_branch
    %14 = sbr.rel (0) target = $region9
  $region8: #{simple_model_forward.1} parent=0 // pred_region
    _
  $region9: #{simple_model_forward.1} parent=0 // pred_fallthru
    _
  // Predicated region
  $region10: #{simple_model_forward.1} parent=0 // pred_check
    _
  $region11: #{simple_model_forward.1} parent=0 // pred_check_branch
    %16 = sbr.rel (0) target = $region13
  $region12: #{simple_model_forward.1} parent=0 // pred_region
    _
  $region13: #{simple_model_forward.1} parent=0 // pred_fallthru
    _
  // Predicated region
  $region14: #{simple_model_forward.1} parent=0 // pred_check
    _
  $region15: #{simple_model_forward.1} parent=0 // pred_check_branch
    %18 = sbr.rel (0) target = $region17
  $region16: #{simple_model_forward.1} parent=0 // pred_region
    _
  $region17: #{simple_model_forward.1} parent=0 // pred_fallthru
    _
  // Predicated region
  $region18: #{simple_model_forward.1} parent=0 // pred_check
    _
  $region19: #{simple_model_forward.1} parent=0 // pred_check_branch
    %20 = sbr.rel (0) target = $region21
  $region20: #{simple_model_forward.1} parent=0 // pred_region
    _
  $region21: #{simple_model_forward.1} parent=0 // pred_fallthru
    _
  %v21 = vld [vmem:[%s0] sm:$0xff]
  %v22 = vld [vmem:[%s0 + $0x8] sm:$0xff]
  %v23 = vld [vmem:[%s0 + $0x10] sm:$0xff]
  %v24 = vld [vmem:[%s0 + $0x18] sm:$0xff]
  %v25 = vld [vmem:[%s0 + $0x20] sm:$0xff]
  %v26 = vld [vmem:[%s0 + $0x28] sm:$0xff]
  %v27 = vld [vmem:[%s0 + $0x30] sm:$0xff]
  %v28 = vld [vmem:[%s0 + $0x38] sm:$0xff]
  %v29 = vld [vmem:[%s0 + $0x40] sm:$0xff]
  %v30 = vld [vmem:[%s0 + $0x48] sm:$0xff]
  %v31 = vld [vmem:[%s0 + $0x50] sm:$0xff]
  %v32 = vld [vmem:[%s0 + $0x58] sm:$0xff]
  %v33 = vld [vmem:[%s0 + $0x60] sm:$0xff]
  %v34 = vld [vmem:[%s0 + $0x68] sm:$0xff]
  %v35 = vld [vmem:[%s0 + $0x70] sm:$0xff]
  %v36 = vld [vmem:[%s0 + $0x78] sm:$0xff]
  %v37 = vld [vmem:[%s1] sm:$0xff]
  %v38 = vld [vmem:[%s1 + $0x8] sm:$0x3]
  %v39 = vld [vmem:[%s2] sm:$0xff]
  %v40 = vld [vmem:[%s2 + $0x8] sm:$0x3]
  %42 = vset.pattern.permute.xlu0 0
  %43 = vperm.xlu0 %42, %v39
  %v44 = vpop.permute.xlu0 %43
  %47 = vset.pattern.permute.xlu0 0
  %48 = vperm.xlu0 %47, %v40
  %v49 = vpop.permute.xlu0 %48
  %vm51 = vcmask 31744
  %v53 = vsel %vm51, %v37, 0
  %v56 = vsel %vm51, %v38, 0
  %v59 = vsel %vm51, %v21, 0
  %v62 = vsel %vm51, %v22, 0
  %v65 = vsel %vm51, %v23, 0
  %v68 = vsel %vm51, %v24, 0
  %v71 = vsel %vm51, %v25, 0
  %v74 = vsel %vm51, %v26, 0
  %v77 = vsel %vm51, %v27, 0
  %v80 = vsel %vm51, %v28, 0
  %v83 = vsel %vm51, %v29, 0
  %v86 = vsel %vm51, %v30, 0
  %v89 = vsel %vm51, %v31, 0
  %v92 = vsel %vm51, %v32, 0
  %v95 = vsel %vm51, %v33, 0
  %v98 = vsel %vm51, %v34, 0
  %v101 = vsel %vm51, %v35, 0
  %v104 = vsel %vm51, %v36, 0
  %106 = vmatprep.subr.mxu0 0.0
  %107 = vmatpush1.xpose.msra.mxu0 %v59
  %108 = vmatprep.subr.mxu0 0.0
  %109 = vmatpush1.xpose.msra.mxu0 %v62
  %110 = vmatprep.subr.mxu0 0.0
  %111 = vmatpush1.xpose.msra.mxu0 %v65
  %112 = vmatprep.subr.mxu0 0.0
  %113 = vmatpush1.xpose.msra.mxu0 %v68
  %114 = vmatprep.subr.mxu0 0.0
  %115 = vmatpush1.xpose.msra.mxu0 %v71
  %116 = vmatprep.subr.mxu0 0.0
  %117 = vmatpush1.xpose.msra.mxu0 %v74
  %118 = vmatprep.subr.mxu0 0.0
  %119 = vmatpush1.xpose.msra.mxu0 %v77
  %120 = vmatprep.subr.mxu0 0.0
  %121 = vmatpush1.xpose.msra.mxu0 %v80
  %122 = vmatprep.subr.mxu0 0.0
  %123 = vmatpush1.xpose.msra.mxu0 %v83
  %124 = vmatprep.subr.mxu0 0.0
  %125 = vmatpush1.xpose.msra.mxu0 %v86
  %126 = vmatprep.subr.mxu0 0.0
  %127 = vmatpush1.xpose.msra.mxu0 %v89
  %128 = vmatprep.subr.mxu0 0.0
  %129 = vmatpush1.xpose.msra.mxu0 %v92
  %130 = vmatprep.subr.mxu0 0.0
  %131 = vmatpush1.xpose.msra.mxu0 %v95
  %132 = vmatprep.subr.mxu0 0.0
  %133 = vmatpush1.xpose.msra.mxu0 %v98
  %134 = vmatprep.subr.mxu0 0.0
  %135 = vmatpush1.xpose.msra.mxu0 %v101
  %136 = vmatprep.subr.mxu0 0.0
  %137 = vmatpush1.xpose.msra.mxu0 %v104
  %138 = vmatprep.subr.mxu0 0.0
  %139 = vmatpush1.xpose.msra.mxu0 0.0
  %140 = vmatprep.subr.mxu0 0.0
  %141 = vmatpush1.xpose.msra.mxu0 0.0
  %142 = vmatprep.subr.mxu0 0.0
  %143 = vmatpush1.xpose.msra.mxu0 0.0
  %144 = vmatprep.subr.mxu0 0.0
  %145 = vmatpush1.xpose.msra.mxu0 0.0
  %146 = vmatprep.subr.mxu0 0.0
  %147 = vmatpush1.xpose.msra.mxu0 0.0
  %148 = vmatprep.subr.mxu0 0.0
  %149 = vmatpush1.xpose.msra.mxu0 0.0
  %150 = vmatprep.subr.mxu0 0.0
  %151 = vmatpush1.xpose.msra.mxu0 0.0
  %152 = vmatprep.subr.mxu0 0.0
  %153 = vmatpush1.xpose.msra.mxu0 0.0
  %154 = vmatprep.subr.mxu0 0.0
  %155 = vmatpush1.xpose.msra.mxu0 0.0
  %156 = vmatprep.subr.mxu0 0.0
  %157 = vmatpush1.xpose.msra.mxu0 0.0
  %158 = vmatprep.subr.mxu0 0.0
  %159 = vmatpush1.xpose.msra.mxu0 0.0
  %160 = vmatprep.subr.mxu0 0.0
  %161 = vmatpush1.xpose.msra.mxu0 0.0
  %162 = vmatprep.subr.mxu0 0.0
  %163 = vmatpush1.xpose.msra.mxu0 0.0
  %164 = vmatprep.subr.mxu0 0.0
  %165 = vmatpush1.xpose.msra.mxu0 0.0
  %166 = vmatprep.subr.mxu0 0.0
  %167 = vmatpush1.xpose.msra.mxu0 0.0
  %168 = vmatprep.subr.mxu0 0.0
  %169 = vmatpush1.xpose.msra.mxu0 0.0
  %170 = vmatprep.mubr.f32.mxu0 0.0
  %171 = vmatmul.mubr.f32.gmra.mrb[0].mxu0 %v53
  %v172 = vpop.f32.mrb[0].mxu0
  %v173 = vadd.f32 %v44, %v172
  %v174 = vpop.f32.mrb[0].mxu0
  %175 = vmatprep.mubr.f32.mxu0 0.0
  %176 = vmatmul.mubr.f32.gmra.mrb[0].mxu0 %v56
  %v177 = vpop.f32.mrb[0].mxu0
  %v178 = vadd.f32 %v49, %v177
  %v179 = vpop.f32.mrb[0].mxu0
  %180 = vdwg.mxu0
  %v181 = vmax.f32 %v173, 0.0
  %v182 = vmax.f32 %v178, 0.0
  %v183 = vld [vmem:[%s3] sm:$0xff]
  %v184 = vld [vmem:[%s3 + $0x8] sm:$0x3]
  %186 = vset.pattern.permute.xlu0 0
  %187 = vperm.xlu0 %186, %v183
  %v188 = vpop.permute.xlu0 %187
  %191 = vset.pattern.permute.xlu0 0
  %192 = vperm.xlu0 %191, %v184
  %v193 = vpop.permute.xlu0 %192
  %v195 = vmul.f32 %v181, %v188
  %v196 = vmul.f32 %v182, %v193
  %vm197 = vcmask 1041408
  %v198 = vsel %vm197, %v196, 0.0
  %v199 = vadd.f32 %v195, %v198
  %v200 = vrot.slane %v199, 4
  %v201 = vadd.f32 %v199, %v200
  %v202 = vrot.slane %v201, 2
  %v203 = vadd.f32 %v201, %v202
  %v204 = vrot.slane %v203, 1
  %v205 = vadd.f32 %v203, %v204
  %s206 = sld [smem:[#allocation2]]
  %v207 = vstv %s206
  %v208 = vadd.f32 %v205, %v207
  %209 = vst [vmem:[%s5] sm:$0x1] %v208
  // Predicated region
  $region22: #{simple_model_forward.1} parent=0 // pred_check
    _
  $region23: #{simple_model_forward.1} parent=0 // pred_check_branch
    %211 = sbr.rel (0) target = $region25
  $region24: #{simple_model_forward.1} parent=0 // pred_region
    _
  $region25: #{simple_model_forward.1} parent=0 // pred_fallthru
    _
  // Predicated region
  $region26: #{simple_model_forward.1} parent=0 // pred_check
    _
  $region27: #{simple_model_forward.1} parent=0 // pred_check_branch
    %213 = sbr.rel (0) target = $region29
  $region28: #{simple_model_forward.1} parent=0 // pred_region
    _
  $region29: #{simple_model_forward.1} parent=0 // pred_fallthru
    _

</llo_original>
